<compile_context>
chip_gen: v7x
topology: tpu7x:2x2x1
jax: 0.10.0
libtpu: 0.0.40
codegen_flags: <defaults>
</compile_context>

<pallas_src>
import functools

import jax
import jax.numpy as jnp
import numpy as np
from jax.experimental import pallas as pl
from jax.experimental.pallas import tpu as pltpu

_LANE = 128
_SUBLANE = 8
_MAX_PED_TILE = 512


def _round_up(x, m):
    return ((x + m - 1) // m) * m


def _choose_ped_tile(num_ped, max_tile=_MAX_PED_TILE):
    """Pick a ped tile TP (multiple of 8) and padded ped count.

    Uses the fewest tiles possible but at least 2 grid steps (so v7x can shard the
    'parallel' ped axis across its two TensorCores), with TP capped at `max_tile`.
    """
    p8 = _round_up(max(int(num_ped), 1), _SUBLANE)
    if p8 <= _SUBLANE:
        tp = _SUBLANE                      # single tiny tile; splitting would only add padding
    else:
        n_tiles = max(2, -(-p8 // max_tile))
        tp = _round_up(-(-p8 // n_tiles), _SUBLANE)
    p_pad = _round_up(p8, tp)
    return tp, p_pad


# ---------------------------------------------------------------------------
# Pallas kernel: clamp + (folded) layer-1 matmuls + relu + layer-2 matmul + relu
# ---------------------------------------------------------------------------
def _static_scene_kernel(scene_ref,   # (2, C_pad) f32: row0 = boundary x, row1 = boundary y (zero-padded)
                         ph_ref,      # (TP, hd_pad) f32: packed [pos_x, pos_y, hidden..., 0...] per-ped stream
                         wrelx_ref,   # (C_pad, mlp8_pad) folded spatial weight, x coords (incl. 1/ns)
                         wrely_ref,   # (C_pad, mlp8_pad) folded spatial weight, y coords (incl. 1/ns)
                         wph_ref,     # (hd_pad, mlp8_pad) layer-1 hidden-block weight (rows 0,1 and pad rows are 0)
                         bf_ref,      # (1, mlp8_pad) f32 folded bias (b1 @ w2e.T + b2)
                         w3_ref,      # (mlp8_pad, out_pad) layer-2 weight, transposed, zero-padded
                         b3_ref,      # (1, out_pad) f32
                         out_ref,     # (TP, out_pad) f32
                         *,
                         neighborhood_size,
                         compute_dtype):
    ns = jnp.float32(neighborhood_size)

    scene_x = scene_ref[0:1, :]            # (1, C_pad)
    scene_y = scene_ref[1:2, :]            # (1, C_pad)
    pos_x = ph_ref[:, 0:1]                 # (TP, 1)
    pos_y = ph_ref[:, 1:2]                 # (TP, 1)

    # clamp in f32 on the VPU; the 1/ns scale and the spatial-embedding matmul are folded
    # into wrelx / wrely at prepare time.
    rel_x = jnp.clip(scene_x - pos_x, -ns, ns)          # (TP, C_pad)
    rel_y = jnp.clip(scene_y - pos_y, -ns, ns)          # (TP, C_pad)

    # Layer 1 with the spatial embedding folded in: three accumulated MXU dots
    # (no lane-axis concat copy), f32 accumulation, operands optionally bf16.
    h1 = (jnp.dot(rel_x.astype(compute_dtype), wrelx_ref[...],
                  preferred_element_type=jnp.float32)
          + jnp.dot(rel_y.astype(compute_dtype), wrely_ref[...],
                    preferred_element_type=jnp.float32)
          + jnp.dot(ph_ref[...].astype(compute_dtype), wph_ref[...],
                    preferred_element_type=jnp.float32)
          + bf_ref[...])
    h1 = jnp.maximum(h1, 0.0)

    # Layer 2, lane-dense padded output store.
    h2 = jnp.dot(h1.astype(compute_dtype), w3_ref[...],
                 preferred_element_type=jnp.float32) + b3_ref[...]
    out_ref[...] = jnp.maximum(h2, 0.0)


# ---------------------------------------------------------------------------
# One-time parameter preparation (hoisted out of the forward path)
# ---------------------------------------------------------------------------
def prepare_static_scene_params(scene_info, params, *, neighborhood_size,
                                compute_dtype=jnp.bfloat16):
    """Fold / transpose / pad / cast all weights once; reuse the dict across calls."""
    w1 = jnp.asarray(params["w1"], jnp.float32)   # (emb, 2*C)   PyTorch (out, in)
    b1 = jnp.asarray(params["b1"], jnp.float32)   # (emb,)
    w2 = jnp.asarray(params["w2"], jnp.float32)   # (mlp8, emb + h)
    b2 = jnp.asarray(params["b2"], jnp.float32)   # (mlp8,)
    w3 = jnp.asarray(params["w3"], jnp.float32)   # (bottleneck, mlp8)
    b3 = jnp.asarray(params["b3"], jnp.float32)   # (bottleneck,)

    emb_dim = w1.shape[0]
    num_cells = scene_info.shape[0]
    mlp8 = w2.shape[0]
    h_dim = w2.shape[1] - emb_dim
    bottleneck = w3.shape[0]

    c_pad = _round_up(num_cells, _LANE)
    hd_pad = _round_up(h_dim + 2, _LANE)          # packed stream: 2 pos lanes + hidden
    mlp8_pad = _round_up(mlp8, _LANE)
    out_pad = _round_up(bottleneck, _LANE)

    # interleaved [x0,y0,x1,y1,...] flatten == even/odd column split of the embedding weight
    w1x_t = w1[:, 0::2].T               # (C, emb)
    w1y_t = w1[:, 1::2].T               # (C, emb)
    w2e_t = w2[:, :emb_dim].T           # (emb, mlp8)
    w2h_t = w2[:, emb_dim:].T           # (h, mlp8)

    inv_ns = 1.0 / float(neighborhood_size)
    # No activation between spatial_embedding and layer 1 -> fold them (and 1/ns) together.
    w1x_fold = (w1x_t @ w2e_t) * inv_ns                         # (C, mlp8)
    w1y_fold = (w1y_t @ w2e_t) * inv_ns                         # (C, mlp8)
    b_fold = b1.reshape(1, -1) @ w2e_t + b2.reshape(1, -1)      # (1, mlp8)

    def pad2(a, rows, cols):
        return jnp.pad(a, ((0, rows - a.shape[0]), (0, cols - a.shape[1])))

    wrelx = pad2(w1x_fold, c_pad, mlp8_pad).astype(compute_dtype)        # (C_pad, mlp8_pad)
    wrely = pad2(w1y_fold, c_pad, mlp8_pad).astype(compute_dtype)        # (C_pad, mlp8_pad)
    # Hidden-block weight offset by 2 zero rows so it lines up with the packed
    # [pos_x, pos_y, hidden..., 0...] stream (pos lanes hit zero weight rows).
    wph = jnp.pad(w2h_t, ((2, hd_pad - 2 - h_dim),
                          (0, mlp8_pad - mlp8))).astype(compute_dtype)   # (hd_pad, mlp8_pad)
    bf_p = pad2(b_fold, 1, mlp8_pad)                                     # (1, mlp8_pad) f32
    w3_p = pad2(w3.T, mlp8_pad, out_pad).astype(compute_dtype)           # (mlp8_pad, out_pad)
    b3_p = pad2(b3.reshape(1, -1), 1, out_pad)                           # (1, out_pad) f32

    scene_t = pad2(jnp.asarray(scene_info, jnp.float32).T, 2, c_pad)     # (2, C_pad) f32

    return dict(scene=scene_t, wrelx=wrelx, wrely=wrely, wph=wph, bf=bf_p,
                w3=w3_p, b3=b3_p,
                h_dim=int(h_dim), hd_pad=int(hd_pad), c_pad=int(c_pad),
                mlp8_pad=int(mlp8_pad), out_pad=int(out_pad),
                bottleneck=int(bottleneck),
                neighborhood_size=float(neighborhood_size),
                compute_dtype=compute_dtype)


# ---------------------------------------------------------------------------
# Forward call (parameters already prepared)
# ---------------------------------------------------------------------------
def static_scene_forward(prep, curr_end_pos, curr_hidden_1):
    num_ped = int(curr_end_pos.shape[0])
    h_dim = prep["h_dim"]
    c_pad = prep["c_pad"]
    hd_pad = prep["hd_pad"]
    mlp8_pad = prep["mlp8_pad"]
    out_pad = prep["out_pad"]

    tp, p_pad = _choose_ped_tile(num_ped)
    nsteps = p_pad // tp

    pos = jnp.asarray(curr_end_pos, jnp.float32)
    hid = jnp.asarray(curr_hidden_1, jnp.float32)
    # Single lane-dense per-ped stream: [pos_x, pos_y, hidden..., zeros] -> (p_pad, hd_pad)
    ph = jnp.concatenate([pos, hid], axis=1)
    ph = jnp.pad(ph, ((0, p_pad - num_ped), (0, hd_pad - (h_dim + 2))))

    kernel = functools.partial(_static_scene_kernel,
                               neighborhood_size=prep["neighborhood_size"],
                               compute_dtype=prep["compute_dtype"])

    const = lambda i: (0, 0)   # weights / scene stay VMEM-resident across the ped grid
    tiled = lambda i: (i, 0)   # per-ped stream / output tiles

    weights = (prep["scene"], prep["wrelx"], prep["wrely"], prep["wph"],
               prep["bf"], prep["w3"], prep["b3"])
    weight_bytes = sum(int(a.size) * a.dtype.itemsize for a in weights)
    stream_bytes = tp * hd_pad * 4 + tp * out_pad * 4
    # Default pipelining double-buffers every block (including constant-index weights);
    # budget explicitly with headroom, capped to the smallest-generation (v7x) VMEM.
    vmem_limit = int(min(64 << 20,
                         max(16 << 20, 2 * (weight_bytes + stream_bytes) + (2 << 20))))

    flops = 2 * p_pad * mlp8_pad * (2 * c_pad + hd_pad) + 2 * p_pad * mlp8_pad * out_pad
    bytes_accessed = int(ph.size) * 4 + p_pad * out_pad * 4 + weight_bytes

    out_full = pl.pallas_call(
        kernel,
        out_shape=jax.ShapeDtypeStruct((p_pad, out_pad), jnp.float32),
        grid=(nsteps,),
        in_specs=[
            pl.BlockSpec((2, c_pad), const),              # scene (x row, y row)
            pl.BlockSpec((tp, hd_pad), tiled),            # packed pos+hidden stream
            pl.BlockSpec((c_pad, mlp8_pad), const),       # folded spatial weight (x)
            pl.BlockSpec((c_pad, mlp8_pad), const),       # folded spatial weight (y)
            pl.BlockSpec((hd_pad, mlp8_pad), const),      # hidden-block weight (packed layout)
            pl.BlockSpec((1, mlp8_pad), const),           # folded bias
            pl.BlockSpec((mlp8_pad, out_pad), const),     # layer-2 weight
            pl.BlockSpec((1, out_pad), const),            # layer-2 bias
        ],
        out_specs=pl.BlockSpec((tp, out_pad), tiled),
        compiler_params=pltpu.CompilerParams(
            dimension_semantics=("parallel",),
            vmem_limit_bytes=vmem_limit),
        cost_estimate=pl.CostEstimate(flops=flops, transcendentals=0,
                                      bytes_accessed=bytes_accessed),
    )(prep["scene"], ph, prep["wrelx"], prep["wrely"], prep["wph"],
      prep["bf"], prep["w3"], prep["b3"])

    # Strip ped / lane padding outside the kernel (keeps in-kernel stores lane-dense).
    return out_full[:num_ped, :prep["bottleneck"]]


# ---------------------------------------------------------------------------
# Pure-JAX reference mirroring the PyTorch code exactly (for correctness check)
# ---------------------------------------------------------------------------
def static_scene_forward_ref(scene_info, curr_end_pos, curr_hidden_1, params,
                             *, neighborhood_size):
    num_ped = curr_end_pos.shape[0]
    num_cells = scene_info.shape[0]
    ped_rep = jnp.repeat(curr_end_pos, num_cells, axis=0)                 # (P*C, 2)
    boundary = jnp.tile(scene_info, (num_ped, 1))                         # (P*C, 2)
    rel = boundary - ped_rep
    rel = jnp.clip(rel, -neighborhood_size, neighborhood_size) / neighborhood_size
    rel_flat = rel.reshape(num_ped, num_cells * 2)                        # interleaved x,y
    emb = rel_flat @ params["w1"].T + params["b1"]
    h = jnp.concatenate([emb, curr_hidden_1], axis=1)
    h = jnp.maximum(h @ params["w2"].T + params["b2"], 0.0)
    h = jnp.maximum(h @ params["w3"].T + params["b3"], 0.0)
    return h


def _init_linear(key, out_dim, in_dim):
    kw, kb = jax.random.split(key)
    bound = 1.0 / np.sqrt(in_dim)
    w = jax.random.uniform(kw, (out_dim, in_dim), jnp.float32, -bound, bound)
    b = jax.random.uniform(kb, (out_dim,), jnp.float32, -bound, bound)
    return w, b


if __name__ == "__main__":
    # Module hyperparameters (down_samples=-1 -> spatial_embedding in_dim = 2*num_cells).
    num_ped = 20
    num_cells = 40
    embedding_dim = 16
    h_dim = 32
    mlp_dim = 8            # first MLP layer width = mlp_dim * 8 = 64
    bottleneck_dim = 32
    neighborhood_size = 2.0
    # batch_norm=False, dropout=0.0, activation='relu' (inference semantics)
    # TODO(synk): scene_information dict / .npy loading in set_dset_list is host-side I/O,
    # replaced here by a synthetic boundary-point array.

    key = jax.random.PRNGKey(0)
    k_scene, k_pos, k_hid, k_w1, k_w2, k_w3 = jax.random.split(key, 6)

    scene_info = jax.random.uniform(k_scene, (num_cells, 2), jnp.float32, -5.0, 5.0)
    curr_end_pos = jax.random.uniform(k_pos, (num_ped, 2), jnp.float32, -5.0, 5.0)
    curr_hidden_1 = jax.random.normal(k_hid, (num_ped, h_dim), jnp.float32)

    w1, b1 = _init_linear(k_w1, embedding_dim, 2 * num_cells)
    w2, b2 = _init_linear(k_w2, mlp_dim * 8, embedding_dim + h_dim)
    w3, b3 = _init_linear(k_w3, bottleneck_dim, mlp_dim * 8)
    params = {"w1": w1, "b1": b1, "w2": w2, "b2": b2, "w3": w3, "b3": b3}

    ref = static_scene_forward_ref(scene_info, curr_end_pos, curr_hidden_1, params,
                                   neighborhood_size=neighborhood_size)

    # f32 MXU operands: tight agreement (only weight-folding reassociation differs).
    prep_f32 = prepare_static_scene_params(scene_info, params,
                                           neighborhood_size=neighborhood_size,
                                           compute_dtype=jnp.float32)
    out_f32 = jax.block_until_ready(
        static_scene_forward(prep_f32, curr_end_pos, curr_hidden_1))
    np.testing.assert_allclose(np.asarray(out_f32), np.asarray(ref),
                               rtol=1e-4, atol=1e-4)

    # bf16 MXU operands (default, ~3x MXU throughput on v6e/v7x): looser tolerance.
    prep_bf16 = prepare_static_scene_params(scene_info, params,
                                            neighborhood_size=neighborhood_size,
                                            compute_dtype=jnp.bfloat16)
    out_bf16 = jax.block_until_ready(
        static_scene_forward(prep_bf16, curr_end_pos, curr_hidden_1))
    np.testing.assert_allclose(np.asarray(out_bf16), np.asarray(ref),
                               rtol=5e-2, atol=5e-2)

    print("KERNEL_OK")
</pallas_src>

<mosaic_0001>
module attributes {stable_mosaic.version = 11 : i64} {
  func.func @_static_scene_kernel(%arg0: i32, %arg1: memref<2x128xf32, #tpu.memory_space<vmem>>, %arg2: memref<16x128xf32, #tpu.memory_space<vmem>>, %arg3: memref<128x128xf32, #tpu.memory_space<vmem>>, %arg4: memref<128x128xf32, #tpu.memory_space<vmem>>, %arg5: memref<128x128xf32, #tpu.memory_space<vmem>>, %arg6: memref<1x128xf32, #tpu.memory_space<vmem>>, %arg7: memref<128x128xf32, #tpu.memory_space<vmem>>, %arg8: memref<1x128xf32, #tpu.memory_space<vmem>>, %arg9: memref<16x128xf32, #tpu.memory_space<vmem>>) attributes {dimension_semantics = [#tpu.dimension_semantics<parallel>], iteration_bounds = array<i64: 2>, scalar_prefetch = 0 : i64, scratch_operands = 0 : i64, tpu.core_type = #tpu.core_type<tc>, window_params = [{pipeline_mode = #tpu.pipeline_mode<synchronous>, transform_indices = @transform_0, window_bounds = array<i64: 2, 128>}, {transform_indices = @transform_1, window_bounds = array<i64: 16, 128>}, {pipeline_mode = #tpu.pipeline_mode<synchronous>, transform_indices = @transform_2, window_bounds = array<i64: 128, 128>}, {pipeline_mode = #tpu.pipeline_mode<synchronous>, transform_indices = @transform_3, window_bounds = array<i64: 128, 128>}, {pipeline_mode = #tpu.pipeline_mode<synchronous>, transform_indices = @transform_4, window_bounds = array<i64: 128, 128>}, {pipeline_mode = #tpu.pipeline_mode<synchronous>, transform_indices = @transform_5, window_bounds = array<i64: 1, 128>}, {pipeline_mode = #tpu.pipeline_mode<synchronous>, transform_indices = @transform_6, window_bounds = array<i64: 128, 128>}, {pipeline_mode = #tpu.pipeline_mode<synchronous>, transform_indices = @transform_7, window_bounds = array<i64: 1, 128>}, {transform_indices = @transform_8, window_bounds = array<i64: 16, 128>}]} {
    %c0 = arith.constant 0 : index
    %c0_0 = arith.constant 0 : index
    %0 = vector.load %arg1[%c0, %c0_0] : memref<2x128xf32, #tpu.memory_space<vmem>>, vector<1x128xf32>
    %c1 = arith.constant 1 : index
    %c0_1 = arith.constant 0 : index
    %1 = vector.load %arg1[%c1, %c0_1] : memref<2x128xf32, #tpu.memory_space<vmem>>, vector<1x128xf32>
    %c0_2 = arith.constant 0 : index
    %c0_3 = arith.constant 0 : index
    %2 = vector.load %arg2[%c0_2, %c0_3] : memref<16x128xf32, #tpu.memory_space<vmem>>, vector<16x1xf32>
    %c0_4 = arith.constant 0 : index
    %c1_5 = arith.constant 1 : index
    %3 = vector.load %arg2[%c0_4, %c1_5] : memref<16x128xf32, #tpu.memory_space<vmem>>, vector<16x1xf32>
    %4 = vector.broadcast %0 : vector<1x128xf32> to vector<16x128xf32>
    %5 = vector.broadcast %2 : vector<16x1xf32> to vector<16x128xf32>
    %6 = arith.subf %4, %5 : vector<16x128xf32>
    %cst = arith.constant 0.000000e+00 : f32
    %cst_6 = arith.constant 2.000000e+00 : f32
    %7 = arith.subf %cst, %cst_6 : f32
    %cst_7 = arith.constant 2.000000e+00 : f32
    %8 = vector.broadcast %7 : f32 to vector<16x128xf32>
    %9 = arith.maximumf %8, %6 : vector<16x128xf32>
    %10 = vector.broadcast %cst_7 : f32 to vector<16x128xf32>
    %11 = arith.minimumf %10, %9 : vector<16x128xf32>
    %12 = vector.broadcast %1 : vector<1x128xf32> to vector<16x128xf32>
    %13 = vector.broadcast %3 : vector<16x1xf32> to vector<16x128xf32>
    %14 = arith.subf %12, %13 : vector<16x128xf32>
    %cst_8 = arith.constant 0.000000e+00 : f32
    %cst_9 = arith.constant 2.000000e+00 : f32
    %15 = arith.subf %cst_8, %cst_9 : f32
    %cst_10 = arith.constant 2.000000e+00 : f32
    %16 = vector.broadcast %15 : f32 to vector<16x128xf32>
    %17 = arith.maximumf %16, %14 : vector<16x128xf32>
    %18 = vector.broadcast %cst_10 : f32 to vector<16x128xf32>
    %19 = arith.minimumf %18, %17 : vector<16x128xf32>
    %c0_11 = arith.constant 0 : index
    %c0_12 = arith.constant 0 : index
    %20 = vector.load %arg3[%c0_11, %c0_12] : memref<128x128xf32, #tpu.memory_space<vmem>>, vector<128x128xf32>
    %cst_13 = arith.constant dense<0.000000e+00> : vector<16x128xf32>
    %21 = tpu.matmul %11, %20, %cst_13 {dimension_numbers = #tpu.dot_dimension_numbers<[1], [0], [0], [1], [0, 0, 1, 1], [], []>} : vector<16x128xf32>, vector<128x128xf32>, vector<16x128xf32> -> vector<16x128xf32>
    %c0_14 = arith.constant 0 : index
    %c0_15 = arith.constant 0 : index
    %22 = vector.load %arg4[%c0_14, %c0_15] : memref<128x128xf32, #tpu.memory_space<vmem>>, vector<128x128xf32>
    %cst_16 = arith.constant dense<0.000000e+00> : vector<16x128xf32>
    %23 = tpu.matmul %19, %22, %cst_16 {dimension_numbers = #tpu.dot_dimension_numbers<[1], [0], [0], [1], [0, 0, 1, 1], [], []>} : vector<16x128xf32>, vector<128x128xf32>, vector<16x128xf32> -> vector<16x128xf32>
    %24 = arith.addf %21, %23 : vector<16x128xf32>
    %c0_17 = arith.constant 0 : index
    %c0_18 = arith.constant 0 : index
    %25 = vector.load %arg2[%c0_17, %c0_18] : memref<16x128xf32, #tpu.memory_space<vmem>>, vector<16x128xf32>
    %c0_19 = arith.constant 0 : index
    %c0_20 = arith.constant 0 : index
    %26 = vector.load %arg5[%c0_19, %c0_20] : memref<128x128xf32, #tpu.memory_space<vmem>>, vector<128x128xf32>
    %cst_21 = arith.constant dense<0.000000e+00> : vector<16x128xf32>
    %27 = tpu.matmul %25, %26, %cst_21 {dimension_numbers = #tpu.dot_dimension_numbers<[1], [0], [0], [1], [0, 0, 1, 1], [], []>} : vector<16x128xf32>, vector<128x128xf32>, vector<16x128xf32> -> vector<16x128xf32>
    %28 = arith.addf %24, %27 : vector<16x128xf32>
    %c0_22 = arith.constant 0 : index
    %c0_23 = arith.constant 0 : index
    %29 = vector.load %arg6[%c0_22, %c0_23] : memref<1x128xf32, #tpu.memory_space<vmem>>, vector<1x128xf32>
    %30 = vector.broadcast %29 : vector<1x128xf32> to vector<16x128xf32>
    %31 = arith.addf %28, %30 : vector<16x128xf32>
    %cst_24 = arith.constant 0.000000e+00 : f32
    %32 = vector.broadcast %cst_24 : f32 to vector<16x128xf32>
    %33 = arith.maximumf %31, %32 : vector<16x128xf32>
    %c0_25 = arith.constant 0 : index
    %c0_26 = arith.constant 0 : index
    %34 = vector.load %arg7[%c0_25, %c0_26] : memref<128x128xf32, #tpu.memory_space<vmem>>, vector<128x128xf32>
    %cst_27 = arith.constant dense<0.000000e+00> : vector<16x128xf32>
    %35 = tpu.matmul %33, %34, %cst_27 {dimension_numbers = #tpu.dot_dimension_numbers<[1], [0], [0], [1], [0, 0, 1, 1], [], []>} : vector<16x128xf32>, vector<128x128xf32>, vector<16x128xf32> -> vector<16x128xf32>
    %c0_28 = arith.constant 0 : index
    %c0_29 = arith.constant 0 : index
    %36 = vector.load %arg8[%c0_28, %c0_29] : memref<1x128xf32, #tpu.memory_space<vmem>>, vector<1x128xf32>
    %37 = vector.broadcast %36 : vector<1x128xf32> to vector<16x128xf32>
    %38 = arith.addf %35, %37 : vector<16x128xf32>
    %cst_30 = arith.constant 0.000000e+00 : f32
    %39 = vector.broadcast %cst_30 : f32 to vector<16x128xf32>
    %40 = arith.maximumf %38, %39 : vector<16x128xf32>
    %c0_31 = arith.constant 0 : index
    %c0_32 = arith.constant 0 : index
    %41 = vector.load %arg9[%c0_31, %c0_32] : memref<16x128xf32, #tpu.memory_space<vmem>>, vector<16x128xf32>
    tpu.vector_store %arg9[%c0_31, %c0_32], %40 {strides = array<i32>} : memref<16x128xf32, #tpu.memory_space<vmem>>, vector<16x128xf32>,
    return
  }
  func.func @transform_0(%arg0: i32) -> (i32, i32) {
    %c0_i32 = arith.constant 0 : i32
    %c0_i32_0 = arith.constant 0 : i32
    %c0_i32_1 = arith.constant 0 : i32
    return %c0_i32, %c0_i32_0 : i32, i32
  }
  func.func @transform_1(%arg0: i32) -> (i32, i32) {
    %c0_i32 = arith.constant 0 : i32
    %c0_i32_0 = arith.constant 0 : i32
    return %arg0, %c0_i32 : i32, i32
  }
  func.func @transform_2(%arg0: i32) -> (i32, i32) {
    %c0_i32 = arith.constant 0 : i32
    %c0_i32_0 = arith.constant 0 : i32
    %c0_i32_1 = arith.constant 0 : i32
    return %c0_i32, %c0_i32_0 : i32, i32
  }
  func.func @transform_3(%arg0: i32) -> (i32, i32) {
    %c0_i32 = arith.constant 0 : i32
    %c0_i32_0 = arith.constant 0 : i32
    %c0_i32_1 = arith.constant 0 : i32
    return %c0_i32, %c0_i32_0 : i32, i32
  }
  func.func @transform_4(%arg0: i32) -> (i32, i32) {
    %c0_i32 = arith.constant 0 : i32
    %c0_i32_0 = arith.constant 0 : i32
    %c0_i32_1 = arith.constant 0 : i32
    return %c0_i32, %c0_i32_0 : i32, i32
  }
  func.func @transform_5(%arg0: i32) -> (i32, i32) {
    %c0_i32 = arith.constant 0 : i32
    %c0_i32_0 = arith.constant 0 : i32
    %c0_i32_1 = arith.constant 0 : i32
    return %c0_i32, %c0_i32_0 : i32, i32
  }
  func.func @transform_6(%arg0: i32) -> (i32, i32) {
    %c0_i32 = arith.constant 0 : i32
    %c0_i32_0 = arith.constant 0 : i32
    %c0_i32_1 = arith.constant 0 : i32
    return %c0_i32, %c0_i32_0 : i32, i32
  }
  func.func @transform_7(%arg0: i32) -> (i32, i32) {
    %c0_i32 = arith.constant 0 : i32
    %c0_i32_0 = arith.constant 0 : i32
    %c0_i32_1 = arith.constant 0 : i32
    return %c0_i32, %c0_i32_0 : i32, i32
  }
  func.func @transform_8(%arg0: i32) -> (i32, i32) {
    %c0_i32 = arith.constant 0 : i32
    %c0_i32_0 = arith.constant 0 : i32
    return %arg0, %c0_i32 : i32, i32
  }
}

</mosaic_0001>

<llo_original>
// kernel: tpu_custom_call.1
$region0: #{tpu_custom_call.1}
  #allocation0 [shape = 'u32[]', space=smem, size = 0x4, offset = 0x4, fixed_abs, tag = 'smem constant byte address 0x4 - core index']
  #allocation1 [shape = 'u32[144,128]{1,0:T(1,128)}', space=vmem, size = 0x12000, scoped, tag = 'internal scratch']
  %s0 = inlined_call_operand.hbm [shape: f32[2,128], index: 0, kind: input, shape index: {}]
  %s1 = inlined_call_operand.hbm [shape: f32[32,128], index: 1, kind: input, shape index: {}]
  %s2 = inlined_call_operand.hbm [shape: f32[128,128], index: 2, kind: input, shape index: {}]
  %s3 = inlined_call_operand.hbm [shape: f32[128,128], index: 3, kind: input, shape index: {}]
  %s4 = inlined_call_operand.hbm [shape: f32[128,128], index: 4, kind: input, shape index: {}]
  %s5 = inlined_call_operand.vmem [shape: f32[1,128], index: 5, kind: input, shape index: {}]
  %s6 = inlined_call_operand.hbm [shape: f32[128,128], index: 6, kind: input, shape index: {}]
  %s7 = inlined_call_operand.vmem [shape: f32[1,128], index: 7, kind: input, shape index: {}]
  %s8 = inlined_call_operand.hbm [shape: f32[32,128], index: 8, kind: output, shape index: {}]
  %s9 = sld [smem:[#allocation0]]
  $region89: #{tpu_custom_call.1} parent=0
    _
  %s11 = ssub.s32 1, %s9
  %s12 = scalar_select 0, %s11, %s9
  $region1: #{tpu_custom_call.1} parent=0
    #allocation2 [shape = 'u8[1024]{0}', space=vmem, size = 0x400, scoped, tag = 'input window, operand 0, single buffered']
    #allocation3 [shape = 's32[2]{0}', space=sflag, size = 0x8, scoped, tag = 'scoped memory for tpu_custom_call.1']
    #allocation4 [shape = 's32[2]{0}', space=sflag, size = 0x8, scoped, tag = 'scoped memory for tpu_custom_call.1']
    #allocation5 [shape = 'u8[16384]{0}', space=vmem, size = 0x4000, scoped, tag = 'input window, operand 1']
    #allocation6 [shape = 's32[2]{0}', space=sflag, size = 0x8, scoped, tag = 'scoped memory for tpu_custom_call.1']
    #allocation7 [shape = 'u8[65536]{0}', space=vmem, size = 0x10000, scoped, tag = 'input window, operand 2, single buffered']
    #allocation8 [shape = 'u8[65536]{0}', space=vmem, size = 0x10000, scoped, tag = 'input window, operand 3, single buffered']
    #allocation9 [shape = 's32[1]{0}', space=sflag, size = 0x4, scoped, tag = 'scoped memory for tpu_custom_call.1']
    #allocation10 [shape = 'u8[65536]{0}', space=vmem, size = 0x10000, scoped, tag = 'input window, operand 4, single buffered']
    #allocation11 [shape = 'u8[65536]{0}', space=vmem, size = 0x10000, scoped, tag = 'input window, operand 6, single buffered']
    #allocation12 [shape = 's32[1]{0}', space=sflag, size = 0x4, scoped, tag = 'scoped memory for tpu_custom_call.1']
    #allocation13 [shape = 'u8[16384]{0}', space=vmem, size = 0x4000, scoped, tag = 'output window, operand 0']
    %13 = vsyncpa [#allocation3], 0
    %14 = vsyncpa [#allocation6], 0
    %s15 = scalar_lea.sflag [#allocation6], 1
    %16 = vsyncpa %s15, 0
    %17 = vsyncpa [#allocation9], 0
    %18 = vsyncpa [#allocation12], 0
    %19 = vsyncpa [#allocation4], 0
    %s20 = scalar_lea.sflag [#allocation4], 1
    %21 = vsyncpa %s20, 0
    loop: start=0, step=1, limit=4
    $region2: #{tpu_custom_call.1} parent=1 // loop_pre_header
      _
    $region3: #{tpu_custom_call.1} parent=1 // loop_header
      %s23 = sphi 0, %s27
      %p24 = scmp.ge.s32.totalorder %s23, 4
      %s31 = sphi 0, %s31
      %s33 = sphi 0, %s31
      %s34 = sphi 0, %s33
      %s48 = sphi 0, %s34
      %s54 = sphi 0, %s56
      %s57 = sphi 0, %s54
      %s58 = sphi 0, %s57
      %s74 = sphi 0, %s58
      %s78 = sphi 0, %s78
      %s80 = sphi 0, %s78
      %s81 = sphi 0, %s80
      %s95 = sphi 0, %s81
      %s99 = sphi 0, %s99
      %s101 = sphi 0, %s99
      %s102 = sphi 0, %s101
      %s116 = sphi 0, %s102
      %s120 = sphi 0, %s120
      %s122 = sphi 0, %s120
      %s123 = sphi 0, %s122
      %s137 = sphi 0, %s123
      %s141 = sphi 0, %s141
      %s143 = sphi 0, %s141
      %s144 = sphi 0, %s143
      %s158 = sphi 0, %s144
      %s162 = sphi 0, %s162
      %s164 = sphi 0, %s162
      %s165 = sphi 0, %s164
      %s179 = sphi 0, %s165
      %s183 = sphi 0, %s183
      %s185 = sphi 0, %s183
      %s186 = sphi 0, %s185
      %s200 = sphi 0, %s186
      %s206 = sphi 0, %s208
      %s209 = sphi 0, %s206
      %s210 = sphi 0, %s209
      %s226 = sphi 0, %s210
    $region4: #{tpu_custom_call.1} parent=1 // loop_header_branch
      %26 = sbr.rel (%p24) target = $region8
    $region5: #{tpu_custom_call.1} parent=1 // loop_body
      %s28 = ssub.s32 %s23, 1
      %s29 = ssub.s32 %s23, 2
      %s30 = sadd.s32 %s23, 1
      %s32 = sadd.s32 %s31, 1
      %p35 = scmp.eq.s32.totalorder %s23, 1
      %p36 = scmp.ne.s32.totalorder %s31, %s33
      %p37 = scmp.eq.s32.totalorder %s23, 0
      %p38 = por %p36, %p37
      %p39 = scmp.ne.s32.totalorder %s31, %s33
      %p40 = scmp.eq.s32.totalorder %s28, 1
      %p41 = por %p39, %p40
      %p42 = scmp.ne.s32.totalorder %s33, %s34
      %p43 = scmp.eq.s32.totalorder %s28, 0
      %p44 = por %p42, %p43
      %p45 = scmp.ne.s32.totalorder %s33, %s34
      %p46 = scmp.eq.s32.totalorder %s29, 1
      %p47 = por %p45, %p46
      %p49 = scmp.ne.s32.totalorder %s34, %s48
      %p50 = scmp.eq.s32.totalorder %s29, 0
      %p51 = por %p49, %p50
      %s52 = ssub.s32 %s23, %s30
      %p53 = scmp.eq.s32.totalorder %s52, 0
      %s55 = sadd.s32 %s54, 1
      %s56 = scalar_select %p53, %s54, %s55
      %p59 = pneg %p53
      %p60 = scmp.eq.s32.totalorder %s23, 1
      %p61 = por %p59, %p60
      %p62 = scmp.ne.s32.totalorder %s54, %s57
      %p63 = scmp.eq.s32.totalorder %s23, 0
      %p64 = por %p62, %p63
      %p65 = scmp.ne.s32.totalorder %s54, %s57
      %p66 = scmp.eq.s32.totalorder %s28, 1
      %p67 = por %p65, %p66
      %p68 = scmp.ne.s32.totalorder %s57, %s58
      %p69 = scmp.eq.s32.totalorder %s28, 0
      %p70 = por %p68, %p69
      %p71 = scmp.ne.s32.totalorder %s57, %s58
      %p72 = scmp.eq.s32.totalorder %s29, 1
      %p73 = por %p71, %p72
      %p75 = scmp.ne.s32.totalorder %s58, %s74
      %p76 = scmp.eq.s32.totalorder %s29, 0
      %p77 = por %p75, %p76
      %s79 = sadd.s32 %s78, 1
      %p82 = scmp.eq.s32.totalorder %s23, 1
      %p83 = scmp.ne.s32.totalorder %s78, %s80
      %p84 = scmp.eq.s32.totalorder %s23, 0
      %p85 = por %p83, %p84
      %p86 = scmp.ne.s32.totalorder %s78, %s80
      %p87 = scmp.eq.s32.totalorder %s28, 1
      %p88 = por %p86, %p87
      %p89 = scmp.ne.s32.totalorder %s80, %s81
      %p90 = scmp.eq.s32.totalorder %s28, 0
      %p91 = por %p89, %p90
      %p92 = scmp.ne.s32.totalorder %s80, %s81
      %p93 = scmp.eq.s32.totalorder %s29, 1
      %p94 = por %p92, %p93
      %p96 = scmp.ne.s32.totalorder %s81, %s95
      %p97 = scmp.eq.s32.totalorder %s29, 0
      %p98 = por %p96, %p97
      %s100 = sadd.s32 %s99, 1
      %p103 = scmp.eq.s32.totalorder %s23, 1
      %p104 = scmp.ne.s32.totalorder %s99, %s101
      %p105 = scmp.eq.s32.totalorder %s23, 0
      %p106 = por %p104, %p105
      %p107 = scmp.ne.s32.totalorder %s99, %s101
      %p108 = scmp.eq.s32.totalorder %s28, 1
      %p109 = por %p107, %p108
      %p110 = scmp.ne.s32.totalorder %s101, %s102
      %p111 = scmp.eq.s32.totalorder %s28, 0
      %p112 = por %p110, %p111
      %p113 = scmp.ne.s32.totalorder %s101, %s102
      %p114 = scmp.eq.s32.totalorder %s29, 1
      %p115 = por %p113, %p114
      %p117 = scmp.ne.s32.totalorder %s102, %s116
      %p118 = scmp.eq.s32.totalorder %s29, 0
      %p119 = por %p117, %p118
      %s121 = sadd.s32 %s120, 1
      %p124 = scmp.eq.s32.totalorder %s23, 1
      %p125 = scmp.ne.s32.totalorder %s120, %s122
      %p126 = scmp.eq.s32.totalorder %s23, 0
      %p127 = por %p125, %p126
      %p128 = scmp.ne.s32.totalorder %s120, %s122
      %p129 = scmp.eq.s32.totalorder %s28, 1
      %p130 = por %p128, %p129
      %p131 = scmp.ne.s32.totalorder %s122, %s123
      %p132 = scmp.eq.s32.totalorder %s28, 0
      %p133 = por %p131, %p132
      %p134 = scmp.ne.s32.totalorder %s122, %s123
      %p135 = scmp.eq.s32.totalorder %s29, 1
      %p136 = por %p134, %p135
      %p138 = scmp.ne.s32.totalorder %s123, %s137
      %p139 = scmp.eq.s32.totalorder %s29, 0
      %p140 = por %p138, %p139
      %s142 = sadd.s32 %s141, 1
      %p145 = scmp.eq.s32.totalorder %s23, 1
      %p146 = scmp.ne.s32.totalorder %s141, %s143
      %p147 = scmp.eq.s32.totalorder %s23, 0
      %p148 = por %p146, %p147
      %p149 = scmp.ne.s32.totalorder %s141, %s143
      %p150 = scmp.eq.s32.totalorder %s28, 1
      %p151 = por %p149, %p150
      %p152 = scmp.ne.s32.totalorder %s143, %s144
      %p153 = scmp.eq.s32.totalorder %s28, 0
      %p154 = por %p152, %p153
      %p155 = scmp.ne.s32.totalorder %s143, %s144
      %p156 = scmp.eq.s32.totalorder %s29, 1
      %p157 = por %p155, %p156
      %p159 = scmp.ne.s32.totalorder %s144, %s158
      %p160 = scmp.eq.s32.totalorder %s29, 0
      %p161 = por %p159, %p160
      %s163 = sadd.s32 %s162, 1
      %p166 = scmp.eq.s32.totalorder %s23, 1
      %p167 = scmp.ne.s32.totalorder %s162, %s164
      %p168 = scmp.eq.s32.totalorder %s23, 0
      %p169 = por %p167, %p168
      %p170 = scmp.ne.s32.totalorder %s162, %s164
      %p171 = scmp.eq.s32.totalorder %s28, 1
      %p172 = por %p170, %p171
      %p173 = scmp.ne.s32.totalorder %s164, %s165
      %p174 = scmp.eq.s32.totalorder %s28, 0
      %p175 = por %p173, %p174
      %p176 = scmp.ne.s32.totalorder %s164, %s165
      %p177 = scmp.eq.s32.totalorder %s29, 1
      %p178 = por %p176, %p177
      %p180 = scmp.ne.s32.totalorder %s165, %s179
      %p181 = scmp.eq.s32.totalorder %s29, 0
      %p182 = por %p180, %p181
      %s184 = sadd.s32 %s183, 1
      %p187 = scmp.eq.s32.totalorder %s23, 1
      %p188 = scmp.ne.s32.totalorder %s183, %s185
      %p189 = scmp.eq.s32.totalorder %s23, 0
      %p190 = por %p188, %p189
      %p191 = scmp.ne.s32.totalorder %s183, %s185
      %p192 = scmp.eq.s32.totalorder %s28, 1
      %p193 = por %p191, %p192
      %p194 = scmp.ne.s32.totalorder %s185, %s186
      %p195 = scmp.eq.s32.totalorder %s28, 0
      %p196 = por %p194, %p195
      %p197 = scmp.ne.s32.totalorder %s185, %s186
      %p198 = scmp.eq.s32.totalorder %s29, 1
      %p199 = por %p197, %p198
      %p201 = scmp.ne.s32.totalorder %s186, %s200
      %p202 = scmp.eq.s32.totalorder %s29, 0
      %p203 = por %p201, %p202
      %s204 = ssub.s32 %s23, %s30
      %p205 = scmp.eq.s32.totalorder %s204, 0
      %s207 = sadd.s32 %s206, 1
      %s208 = scalar_select %p205, %s206, %s207
      %p211 = pneg %p205
      %p212 = scmp.eq.s32.totalorder %s23, 1
      %p213 = por %p211, %p212
      %p214 = scmp.ne.s32.totalorder %s206, %s209
      %p215 = scmp.eq.s32.totalorder %s23, 0
      %p216 = por %p214, %p215
      %p217 = scmp.ne.s32.totalorder %s206, %s209
      %p218 = scmp.eq.s32.totalorder %s28, 1
      %p219 = por %p217, %p218
      %p220 = scmp.ne.s32.totalorder %s209, %s210
      %p221 = scmp.eq.s32.totalorder %s28, 0
      %p222 = por %p220, %p221
      %p223 = scmp.ne.s32.totalorder %s209, %s210
      %p224 = scmp.eq.s32.totalorder %s29, 1
      %p225 = por %p223, %p224
      %p227 = scmp.ne.s32.totalorder %s210, %s226
      %p228 = scmp.eq.s32.totalorder %s29, 0
      %p229 = por %p227, %p228
      %p230 = scmp.le.s32.totalorder 1, %s23
      %p231 = scmp.lt.s32.totalorder %s23, 3
      %p232 = pnand %p230, %p231
      %p233 = pneg %p232
      // Predicated region
      $region9: #{tpu_custom_call.1} parent=5 // pred_check
        _
      $region10: #{tpu_custom_call.1} parent=5 // pred_check_branch
        %235 = sbr.rel (%p232) target = $region12
      $region11: #{tpu_custom_call.1} parent=5 // pred_region
        %s236 = ssub.s32 %s23, 1
        // Predicated region
        $region13: #{tpu_custom_call.1} parent=11 // pred_check
          %p237 = pneg %p44
        $region14: #{tpu_custom_call.1} parent=11 // pred_check_branch
          %239 = sbr.rel (%p237) target = $region16
        $region15: #{tpu_custom_call.1} parent=11 // pred_region
          %s241 = ssub.s32 32, 32
          %242 = vsyncadd [#allocation3], %s241
          %s244 = sshll.u32 [#allocation2], 4
          %s245 = int_to_ptr.vmem [resolvable:$true] %s244
          %247 = dma.hbm_to_vmem [thread:$0]  %s0, 32, %s245, [#allocation3]
        $region16: #{tpu_custom_call.1} parent=11 // pred_fallthru
          _
        // Predicated region
        $region17: #{tpu_custom_call.1} parent=11 // pred_check
          %p248 = pneg %p91
        $region18: #{tpu_custom_call.1} parent=11 // pred_check_branch
          %250 = sbr.rel (%p248) target = $region20
        $region19: #{tpu_custom_call.1} parent=11 // pred_region
          %s252 = ssub.s32 2048, 2048
          %253 = vsyncadd [#allocation6], %s252
          %s254 = sshll.u32 [#allocation7], 4
          %s255 = int_to_ptr.vmem [resolvable:$true] %s254
          %260 = dma.hbm_to_vmem [thread:$0]  %s2, 2048, %s255, [#allocation6], 128, 128, 8
        $region20: #{tpu_custom_call.1} parent=11 // pred_fallthru
          _
        // Predicated region
        $region21: #{tpu_custom_call.1} parent=11 // pred_check
          %p261 = pneg %p112
        $region22: #{tpu_custom_call.1} parent=11 // pred_check_branch
          %263 = sbr.rel (%p261) target = $region24
        $region23: #{tpu_custom_call.1} parent=11 // pred_region
          %s265 = ssub.s32 2048, 2048
          %266 = vsyncadd [#allocation9], %s265
          %s267 = sshll.u32 [#allocation8], 4
          %s268 = int_to_ptr.vmem [resolvable:$true] %s267
          %273 = dma.hbm_to_vmem [thread:$0]  %s3, 2048, %s268, [#allocation9], 128, 128, 8
        $region24: #{tpu_custom_call.1} parent=11 // pred_fallthru
          _
        // Predicated region
        $region25: #{tpu_custom_call.1} parent=11 // pred_check
          %p274 = pneg %p133
        $region26: #{tpu_custom_call.1} parent=11 // pred_check_branch
          %276 = sbr.rel (%p274) target = $region28
        $region27: #{tpu_custom_call.1} parent=11 // pred_region
          %s278 = ssub.s32 2048, 2048
          %279 = vsyncadd [#allocation9], %s278
          %s280 = sshll.u32 [#allocation10], 4
          %s281 = int_to_ptr.vmem [resolvable:$true] %s280
          %286 = dma.hbm_to_vmem [thread:$0]  %s4, 2048, %s281, [#allocation9], 128, 128, 8
        $region28: #{tpu_custom_call.1} parent=11 // pred_fallthru
          _
        // Predicated region
        $region29: #{tpu_custom_call.1} parent=11 // pred_check
          %p287 = pneg %p154
        $region30: #{tpu_custom_call.1} parent=11 // pred_check_branch
          %289 = sbr.rel (%p287) target = $region32
        $region31: #{tpu_custom_call.1} parent=11 // pred_region
          _
        $region32: #{tpu_custom_call.1} parent=11 // pred_fallthru
          _
        // Predicated region
        $region33: #{tpu_custom_call.1} parent=11 // pred_check
          %p290 = pneg %p175
        $region34: #{tpu_custom_call.1} parent=11 // pred_check_branch
          %292 = sbr.rel (%p290) target = $region36
        $region35: #{tpu_custom_call.1} parent=11 // pred_region
          %s294 = ssub.s32 2048, 2048
          %295 = vsyncadd [#allocation12], %s294
          %s296 = sshll.u32 [#allocation11], 4
          %s297 = int_to_ptr.vmem [resolvable:$true] %s296
          %302 = dma.hbm_to_vmem [thread:$0]  %s6, 2048, %s297, [#allocation12], 128, 128, 8
        $region36: #{tpu_custom_call.1} parent=11 // pred_fallthru
          _
        // Predicated region
        $region37: #{tpu_custom_call.1} parent=11 // pred_check
          %p303 = pneg %p196
        $region38: #{tpu_custom_call.1} parent=11 // pred_check_branch
          %305 = sbr.rel (%p303) target = $region40
        $region39: #{tpu_custom_call.1} parent=11 // pred_region
          _
        $region40: #{tpu_custom_call.1} parent=11 // pred_fallthru
          _
      $region12: #{tpu_custom_call.1} parent=5 // pred_fallthru
        _
      %p306 = scmp.lt.s32.totalorder %s23, 2
      // Predicated region
      $region41: #{tpu_custom_call.1} parent=5 // pred_check
        %p307 = pneg %p306
      $region42: #{tpu_custom_call.1} parent=5 // pred_check_branch
        %309 = sbr.rel (%p307) target = $region44
      $region43: #{tpu_custom_call.1} parent=5 // pred_region
        // Predicated region
        $region45: #{tpu_custom_call.1} parent=43 // pred_check
          %p310 = pneg %p64
        $region46: #{tpu_custom_call.1} parent=43 // pred_check_branch
          %312 = sbr.rel (%p310) target = $region48
        $region47: #{tpu_custom_call.1} parent=43 // pred_region
          %s313 = sand.u32 %s23, 1
          %s314 = scalar_lea.sflag [#allocation6], %s313
          %s315 = sand.u32 %s54, 1
          %s316 = smul.addr %s315, 16
          %s317 = scalar_lea.vmem [#allocation5], %s316
          %s318 = smul.u32 2, %s23
          %s320 = ssub.s32 256, 256
          %321 = vsyncadd %s314, %s320
          %s322 = smul.addr %s318, 128
          %s323 = scalar_lea.hbm %s1, %s322
          %s324 = sshll.u32 %s317, 4
          %s325 = int_to_ptr.vmem [resolvable:$true] %s324
          %330 = dma.hbm_to_vmem [thread:$0]  %s323, 256, %s325, %s314, 128, 128, 8
        $region48: #{tpu_custom_call.1} parent=43 // pred_fallthru
          _
      $region44: #{tpu_custom_call.1} parent=5 // pred_fallthru
        _
      %p331 = scmp.le.s32.totalorder 1, %s23
      %p332 = scmp.lt.s32.totalorder %s23, 3
      %p333 = pnand %p331, %p332
      %p334 = pneg %p333
      // Predicated region
      $region49: #{tpu_custom_call.1} parent=5 // pred_check
        _
      $region50: #{tpu_custom_call.1} parent=5 // pred_check_branch
        %336 = sbr.rel (%p333) target = $region52
      $region51: #{tpu_custom_call.1} parent=5 // pred_region
        %s337 = ssub.s32 %s23, 1
        // Predicated region
        $region53: #{tpu_custom_call.1} parent=51 // pred_check
          %p338 = pneg %p44
        $region54: #{tpu_custom_call.1} parent=51 // pred_check_branch
          %340 = sbr.rel (%p338) target = $region56
        $region55: #{tpu_custom_call.1} parent=51 // pred_region
          %341 = dma.done [#allocation3], 32
        $region56: #{tpu_custom_call.1} parent=51 // pred_fallthru
          _
        %s342 = sand.u32 %s28, 1
        %s343 = scalar_lea.sflag [#allocation6], %s342
        %s344 = sand.u32 %s57, 1
        %s345 = smul.addr %s344, 16
        %s346 = scalar_lea.vmem [#allocation5], %s345
        // Predicated region
        $region57: #{tpu_custom_call.1} parent=51 // pred_check
          %p347 = pneg %p70
        $region58: #{tpu_custom_call.1} parent=51 // pred_check_branch
          %349 = sbr.rel (%p347) target = $region60
        $region59: #{tpu_custom_call.1} parent=51 // pred_region
          %350 = dma.done %s343, 256
        $region60: #{tpu_custom_call.1} parent=51 // pred_fallthru
          _
        // Predicated region
        $region61: #{tpu_custom_call.1} parent=51 // pred_check
          %p351 = pneg %p91
        $region62: #{tpu_custom_call.1} parent=51 // pred_check_branch
          %353 = sbr.rel (%p351) target = $region64
        $region63: #{tpu_custom_call.1} parent=51 // pred_region
          %354 = dma.done [#allocation6], 2048
        $region64: #{tpu_custom_call.1} parent=51 // pred_fallthru
          _
        // Predicated region
        $region65: #{tpu_custom_call.1} parent=51 // pred_check
          %p355 = pneg %p112
        $region66: #{tpu_custom_call.1} parent=51 // pred_check_branch
          %357 = sbr.rel (%p355) target = $region68
        $region67: #{tpu_custom_call.1} parent=51 // pred_region
          %358 = dma.done [#allocation9], 2048
        $region68: #{tpu_custom_call.1} parent=51 // pred_fallthru
          _
        // Predicated region
        $region69: #{tpu_custom_call.1} parent=51 // pred_check
          %p359 = pneg %p133
        $region70: #{tpu_custom_call.1} parent=51 // pred_check_branch
          %361 = sbr.rel (%p359) target = $region72
        $region71: #{tpu_custom_call.1} parent=51 // pred_region
          %362 = dma.done [#allocation9], 2048
        $region72: #{tpu_custom_call.1} parent=51 // pred_fallthru
          _
        // Predicated region
        $region73: #{tpu_custom_call.1} parent=51 // pred_check
          %p363 = pneg %p175
        $region74: #{tpu_custom_call.1} parent=51 // pred_check_branch
          %365 = sbr.rel (%p363) target = $region76
        $region75: #{tpu_custom_call.1} parent=51 // pred_region
          %366 = dma.done [#allocation12], 2048
        $region76: #{tpu_custom_call.1} parent=51 // pred_fallthru
          _
        %p367 = pneg %p44
        %p368 = pneg %p41
        %s369 = sand.u32 %s28, 1
        %s370 = scalar_lea.sflag [#allocation6], %s369
        %s371 = sand.u32 %s57, 1
        %s372 = smul.addr %s371, 16
        %s373 = scalar_lea.vmem [#allocation5], %s372
        %p374 = pneg %p70
        %p375 = pneg %p67
        %p376 = pneg %p91
        %p377 = pneg %p88
        %p378 = pneg %p112
        %p379 = pneg %p109
        %p380 = pneg %p133
        %p381 = pneg %p130
        %p382 = pneg %p154
        %p383 = pneg %p151
        %p384 = pneg %p175
        %p385 = pneg %p172
        %p386 = pneg %p196
        %p387 = pneg %p193
        %p388 = pneg %p222
        %p389 = pneg %p219
        %s390 = sand.u32 %s209, 1
        %s391 = scalar_lea.sflag [#allocation4], %s390
        %s392 = sand.u32 %s209, 1
        %s393 = smul.addr %s392, 16
        %s394 = scalar_lea.vmem [#allocation13], %s393
        %s395 = smul.u32 2, %s28
        %s396 = smul.u32 2, %s28
        %v397 = vld [vmem:[#allocation2] sm:$0x1]
        %v398 = vld [vmem:[#allocation2 + $0x1] sm:$0x1]
        %v399 = vld [vmem:[%s346] sm:$0xff]
        %v400 = vld [vmem:[%s346 + $0x8] sm:$0xff]
        %v401 = vlaneseq
        %v402 = vshrl.u32 %v401, 7
        %v403 = vsub.s32 0, %v402
        %v404 = vrot.slane %v397, %v403
        %406 = vset.pattern.permute.xlu0 0
        %407 = vperm.xlu0 %406, %v399
        %v408 = vpop.permute.xlu0 %407
        %411 = vset.pattern.permute.xlu0 0
        %412 = vperm.xlu0 %411, %v400
        %v413 = vpop.permute.xlu0 %412
        %v415 = vsub.f32 %v404, %v408
        %v416 = vsub.f32 %v404, %v413
        %v417 = vmax.f32 %v415, -2.0
        %v418 = vmax.f32 %v416, -2.0
        %v419 = vmin.f32 %v417, 2.0
        %v420 = vmin.f32 %v418, 2.0
        %v421 = vlaneseq
        %v422 = vshrl.u32 %v421, 7
        %v423 = vsub.s32 0, %v422
        %v424 = vrot.slane %v398, %v423
        %425 = vset.pattern.permute.xlu0 1
        %426 = vperm.xlu0 %425, %v399
        %v427 = vpop.permute.xlu0 %426
        %429 = vset.pattern.permute.xlu0 1
        %430 = vperm.xlu0 %429, %v400
        %v431 = vpop.permute.xlu0 %430
        %v433 = vsub.f32 %v424, %v427
        %v434 = vsub.f32 %v424, %v431
        %v435 = vmax.f32 %v433, -2.0
        %v436 = vmax.f32 %v434, -2.0
        %v437 = vmin.f32 %v435, 2.0
        %v438 = vmin.f32 %v436, 2.0
        %v439 = vld [vmem:[#allocation7] sm:$0xff]
        %v440 = vld [vmem:[#allocation7 + $0x8] sm:$0xff]
        %v441 = vld [vmem:[#allocation7 + $0x10] sm:$0xff]
        %v442 = vld [vmem:[#allocation7 + $0x18] sm:$0xff]
        %v443 = vld [vmem:[#allocation7 + $0x20] sm:$0xff]
        %v444 = vld [vmem:[#allocation7 + $0x28] sm:$0xff]
        %v445 = vld [vmem:[#allocation7 + $0x30] sm:$0xff]
        %v446 = vld [vmem:[#allocation7 + $0x38] sm:$0xff]
        %v447 = vld [vmem:[#allocation7 + $0x40] sm:$0xff]
        %v448 = vld [vmem:[#allocation7 + $0x48] sm:$0xff]
        %v449 = vld [vmem:[#allocation7 + $0x50] sm:$0xff]
        %v450 = vld [vmem:[#allocation7 + $0x58] sm:$0xff]
        %v451 = vld [vmem:[#allocation7 + $0x60] sm:$0xff]
        %v452 = vld [vmem:[#allocation7 + $0x68] sm:$0xff]
        %v453 = vld [vmem:[#allocation7 + $0x70] sm:$0xff]
        %v454 = vld [vmem:[#allocation7 + $0x78] sm:$0xff]
        %v455 = vld [vmem:[#allocation8] sm:$0xff]
        %v456 = vld [vmem:[#allocation8 + $0x8] sm:$0xff]
        %v457 = vld [vmem:[#allocation8 + $0x10] sm:$0xff]
        %v458 = vld [vmem:[#allocation8 + $0x18] sm:$0xff]
        %v459 = vld [vmem:[#allocation8 + $0x20] sm:$0xff]
        %v460 = vld [vmem:[#allocation8 + $0x28] sm:$0xff]
        %v461 = vld [vmem:[#allocation8 + $0x30] sm:$0xff]
        %v462 = vld [vmem:[#allocation8 + $0x38] sm:$0xff]
        %v463 = vld [vmem:[#allocation8 + $0x40] sm:$0xff]
        %v464 = vld [vmem:[#allocation8 + $0x48] sm:$0xff]
        %v465 = vld [vmem:[#allocation8 + $0x50] sm:$0xff]
        %v466 = vld [vmem:[#allocation8 + $0x58] sm:$0xff]
        %v467 = vld [vmem:[#allocation8 + $0x60] sm:$0xff]
        %v468 = vld [vmem:[#allocation8 + $0x68] sm:$0xff]
        %v469 = vld [vmem:[#allocation8 + $0x70] sm:$0xff]
        %v470 = vld [vmem:[#allocation8 + $0x78] sm:$0xff]
        %471 = vmatprep.subr.mxu0 0.0
        %472 = vmatpush1.msra.mxu0 %v455
        %473 = vmatprep.subr.mxu0 0.0
        %474 = vmatpush1.msra.mxu0 %v456
        %475 = vmatprep.subr.mxu0 0.0
        %476 = vmatpush1.msra.mxu0 %v457
        %477 = vmatprep.subr.mxu0 0.0
        %478 = vmatpush1.msra.mxu0 %v458
        %479 = vmatprep.subr.mxu0 0.0
        %480 = vmatpush1.msra.mxu0 %v459
        %481 = vmatprep.subr.mxu0 0.0
        %482 = vmatpush1.msra.mxu0 %v460
        %483 = vmatprep.subr.mxu0 0.0
        %484 = vmatpush1.msra.mxu0 %v461
        %485 = vmatprep.subr.mxu0 0.0
        %486 = vmatpush1.msra.mxu0 %v462
        %487 = vmatprep.subr.mxu0 0.0
        %488 = vmatpush1.msra.mxu0 %v463
        %489 = vmatprep.subr.mxu0 0.0
        %490 = vmatpush1.msra.mxu0 %v464
        %491 = vmatprep.subr.mxu0 0.0
        %492 = vmatpush1.msra.mxu0 %v465
        %493 = vmatprep.subr.mxu0 0.0
        %494 = vmatpush1.msra.mxu0 %v466
        %495 = vmatprep.subr.mxu0 0.0
        %496 = vmatpush1.msra.mxu0 %v467
        %497 = vmatprep.subr.mxu0 0.0
        %498 = vmatpush1.msra.mxu0 %v468
        %499 = vmatprep.subr.mxu0 0.0
        %500 = vmatpush1.msra.mxu0 %v469
        %501 = vmatprep.subr.mxu0 0.0
        %502 = vmatpush1.msra.mxu0 %v470
        %503 = vmatprep.subr.mxu0 0.0
        %504 = vmatpush1.msra.mxu0 0.0
        %505 = vmatprep.subr.mxu0 0.0
        %506 = vmatpush1.msra.mxu0 0.0
        %507 = vmatprep.subr.mxu0 0.0
        %508 = vmatpush1.msra.mxu0 0.0
        %509 = vmatprep.subr.mxu0 0.0
        %510 = vmatpush1.msra.mxu0 0.0
        %511 = vmatprep.subr.mxu0 0.0
        %512 = vmatpush1.msra.mxu0 0.0
        %513 = vmatprep.subr.mxu0 0.0
        %514 = vmatpush1.msra.mxu0 0.0
        %515 = vmatprep.subr.mxu0 0.0
        %516 = vmatpush1.msra.mxu0 0.0
        %517 = vmatprep.subr.mxu0 0.0
        %518 = vmatpush1.msra.mxu0 0.0
        %519 = vmatprep.subr.mxu0 0.0
        %520 = vmatpush1.msra.mxu0 0.0
        %521 = vmatprep.subr.mxu0 0.0
        %522 = vmatpush1.msra.mxu0 0.0
        %523 = vmatprep.subr.mxu0 0.0
        %524 = vmatpush1.msra.mxu0 0.0
        %525 = vmatprep.subr.mxu0 0.0
        %526 = vmatpush1.msra.mxu0 0.0
        %527 = vmatprep.subr.mxu0 0.0
        %528 = vmatpush1.msra.mxu0 0.0
        %529 = vmatprep.subr.mxu0 0.0
        %530 = vmatpush1.msra.mxu0 0.0
        %531 = vmatprep.subr.mxu0 0.0
        %532 = vmatpush1.msra.mxu0 0.0
        %533 = vmatprep.subr.mxu0 0.0
        %534 = vmatpush1.msra.mxu0 0.0
        %535 = vmatprep.mubr.f32.mxu0 0.0
        %536 = vmatmul.mubr.f32.gmra.mrb[0].mxu0 %v437
        %v537 = vpop.f32.mrb[0].mxu0
        %v538 = vadd.f32 0.0, %v537
        %v539 = vpop.f32.mrb[0].mxu0
        %540 = vmatprep.mubr.f32.mxu0 0.0
        %541 = vmatmul.mubr.f32.gmra.mrb[0].mxu0 %v438
        %v542 = vpop.f32.mrb[0].mxu0
        %v543 = vadd.f32 0.0, %v542
        %v544 = vpop.f32.mrb[0].mxu0
        %545 = vdwg.mxu0
        %546 = vmatprep.subr.mxu0 0.0
        %547 = vmatpush1.msra.mxu0 %v439
        %548 = vmatprep.subr.mxu0 0.0
        %549 = vmatpush1.msra.mxu0 %v440
        %550 = vmatprep.subr.mxu0 0.0
        %551 = vmatpush1.msra.mxu0 %v441
        %552 = vmatprep.subr.mxu0 0.0
        %553 = vmatpush1.msra.mxu0 %v442
        %554 = vmatprep.subr.mxu0 0.0
        %555 = vmatpush1.msra.mxu0 %v443
        %556 = vmatprep.subr.mxu0 0.0
        %557 = vmatpush1.msra.mxu0 %v444
        %558 = vmatprep.subr.mxu0 0.0
        %559 = vmatpush1.msra.mxu0 %v445
        %560 = vmatprep.subr.mxu0 0.0
        %561 = vmatpush1.msra.mxu0 %v446
        %562 = vmatprep.subr.mxu0 0.0
        %563 = vmatpush1.msra.mxu0 %v447
        %564 = vmatprep.subr.mxu0 0.0
        %565 = vmatpush1.msra.mxu0 %v448
        %566 = vmatprep.subr.mxu0 0.0
        %567 = vmatpush1.msra.mxu0 %v449
        %568 = vmatprep.subr.mxu0 0.0
        %569 = vmatpush1.msra.mxu0 %v450
        %570 = vmatprep.subr.mxu0 0.0
        %571 = vmatpush1.msra.mxu0 %v451
        %572 = vmatprep.subr.mxu0 0.0
        %573 = vmatpush1.msra.mxu0 %v452
        %574 = vmatprep.subr.mxu0 0.0
        %575 = vmatpush1.msra.mxu0 %v453
        %576 = vmatprep.subr.mxu0 0.0
        %577 = vmatpush1.msra.mxu0 %v454
        %578 = vmatprep.subr.mxu0 0.0
        %579 = vmatpush1.msra.mxu0 0.0
        %580 = vmatprep.subr.mxu0 0.0
        %581 = vmatpush1.msra.mxu0 0.0
        %582 = vmatprep.subr.mxu0 0.0
        %583 = vmatpush1.msra.mxu0 0.0
        %584 = vmatprep.subr.mxu0 0.0
        %585 = vmatpush1.msra.mxu0 0.0
        %586 = vmatprep.subr.mxu0 0.0
        %587 = vmatpush1.msra.mxu0 0.0
        %588 = vmatprep.subr.mxu0 0.0
        %589 = vmatpush1.msra.mxu0 0.0
        %590 = vmatprep.subr.mxu0 0.0
        %591 = vmatpush1.msra.mxu0 0.0
        %592 = vmatprep.subr.mxu0 0.0
        %593 = vmatpush1.msra.mxu0 0.0
        %594 = vmatprep.subr.mxu0 0.0
        %595 = vmatpush1.msra.mxu0 0.0
        %596 = vmatprep.subr.mxu0 0.0
        %597 = vmatpush1.msra.mxu0 0.0
        %598 = vmatprep.subr.mxu0 0.0
        %599 = vmatpush1.msra.mxu0 0.0
        %600 = vmatprep.subr.mxu0 0.0
        %601 = vmatpush1.msra.mxu0 0.0
        %602 = vmatprep.subr.mxu0 0.0
        %603 = vmatpush1.msra.mxu0 0.0
        %604 = vmatprep.subr.mxu0 0.0
        %605 = vmatpush1.msra.mxu0 0.0
        %606 = vmatprep.subr.mxu0 0.0
        %607 = vmatpush1.msra.mxu0 0.0
        %608 = vmatprep.subr.mxu0 0.0
        %609 = vmatpush1.msra.mxu0 0.0
        %610 = vmatprep.mubr.f32.mxu0 0.0
        %611 = vmatmul.mubr.f32.gmra.mrb[0].mxu0 %v419
        %v612 = vpop.f32.mrb[0].mxu0
        %v613 = vadd.f32 %v538, %v612
        %v614 = vpop.f32.mrb[0].mxu0
        %615 = vmatprep.mubr.f32.mxu0 0.0
        %616 = vmatmul.mubr.f32.gmra.mrb[0].mxu0 %v420
        %v617 = vpop.f32.mrb[0].mxu0
        %v618 = vadd.f32 %v543, %v617
        %v619 = vpop.f32.mrb[0].mxu0
        %620 = vdwg.mxu0
        %v621 = vld [vmem:[#allocation10] sm:$0xff]
        %v622 = vld [vmem:[#allocation10 + $0x8] sm:$0xff]
        %v623 = vld [vmem:[#allocation10 + $0x10] sm:$0xff]
        %v624 = vld [vmem:[#allocation10 + $0x18] sm:$0xff]
        %v625 = vld [vmem:[#allocation10 + $0x20] sm:$0xff]
        %v626 = vld [vmem:[#allocation10 + $0x28] sm:$0xff]
        %v627 = vld [vmem:[#allocation10 + $0x30] sm:$0xff]
        %v628 = vld [vmem:[#allocation10 + $0x38] sm:$0xff]
        %v629 = vld [vmem:[#allocation10 + $0x40] sm:$0xff]
        %v630 = vld [vmem:[#allocation10 + $0x48] sm:$0xff]
        %v631 = vld [vmem:[#allocation10 + $0x50] sm:$0xff]
        %v632 = vld [vmem:[#allocation10 + $0x58] sm:$0xff]
        %v633 = vld [vmem:[#allocation10 + $0x60] sm:$0xff]
        %v634 = vld [vmem:[#allocation10 + $0x68] sm:$0xff]
        %v635 = vld [vmem:[#allocation10 + $0x70] sm:$0xff]
        %v636 = vld [vmem:[#allocation10 + $0x78] sm:$0xff]
        %637 = vmatprep.subr.mxu0 0.0
        %638 = vmatpush1.msra.mxu0 %v621
        %639 = vmatprep.subr.mxu0 0.0
        %640 = vmatpush1.msra.mxu0 %v622
        %641 = vmatprep.subr.mxu0 0.0
        %642 = vmatpush1.msra.mxu0 %v623
        %643 = vmatprep.subr.mxu0 0.0
        %644 = vmatpush1.msra.mxu0 %v624
        %645 = vmatprep.subr.mxu0 0.0
        %646 = vmatpush1.msra.mxu0 %v625
        %647 = vmatprep.subr.mxu0 0.0
        %648 = vmatpush1.msra.mxu0 %v626
        %649 = vmatprep.subr.mxu0 0.0
        %650 = vmatpush1.msra.mxu0 %v627
        %651 = vmatprep.subr.mxu0 0.0
        %652 = vmatpush1.msra.mxu0 %v628
        %653 = vmatprep.subr.mxu0 0.0
        %654 = vmatpush1.msra.mxu0 %v629
        %655 = vmatprep.subr.mxu0 0.0
        %656 = vmatpush1.msra.mxu0 %v630
        %657 = vmatprep.subr.mxu0 0.0
        %658 = vmatpush1.msra.mxu0 %v631
        %659 = vmatprep.subr.mxu0 0.0
        %660 = vmatpush1.msra.mxu0 %v632
        %661 = vmatprep.subr.mxu0 0.0
        %662 = vmatpush1.msra.mxu0 %v633
        %663 = vmatprep.subr.mxu0 0.0
        %664 = vmatpush1.msra.mxu0 %v634
        %665 = vmatprep.subr.mxu0 0.0
        %666 = vmatpush1.msra.mxu0 %v635
        %667 = vmatprep.subr.mxu0 0.0
        %668 = vmatpush1.msra.mxu0 %v636
        %669 = vmatprep.subr.mxu0 0.0
        %670 = vmatpush1.msra.mxu0 0.0
        %671 = vmatprep.subr.mxu0 0.0
        %672 = vmatpush1.msra.mxu0 0.0
        %673 = vmatprep.subr.mxu0 0.0
        %674 = vmatpush1.msra.mxu0 0.0
        %675 = vmatprep.subr.mxu0 0.0
        %676 = vmatpush1.msra.mxu0 0.0
        %677 = vmatprep.subr.mxu0 0.0
        %678 = vmatpush1.msra.mxu0 0.0
        %679 = vmatprep.subr.mxu0 0.0
        %680 = vmatpush1.msra.mxu0 0.0
        %681 = vmatprep.subr.mxu0 0.0
        %682 = vmatpush1.msra.mxu0 0.0
        %683 = vmatprep.subr.mxu0 0.0
        %684 = vmatpush1.msra.mxu0 0.0
        %685 = vmatprep.subr.mxu0 0.0
        %686 = vmatpush1.msra.mxu0 0.0
        %687 = vmatprep.subr.mxu0 0.0
        %688 = vmatpush1.msra.mxu0 0.0
        %689 = vmatprep.subr.mxu0 0.0
        %690 = vmatpush1.msra.mxu0 0.0
        %691 = vmatprep.subr.mxu0 0.0
        %692 = vmatpush1.msra.mxu0 0.0
        %693 = vmatprep.subr.mxu0 0.0
        %694 = vmatpush1.msra.mxu0 0.0
        %695 = vmatprep.subr.mxu0 0.0
        %696 = vmatpush1.msra.mxu0 0.0
        %697 = vmatprep.subr.mxu0 0.0
        %698 = vmatpush1.msra.mxu0 0.0
        %699 = vmatprep.subr.mxu0 0.0
        %700 = vmatpush1.msra.mxu0 0.0
        %701 = vmatprep.mubr.f32.mxu0 0.0
        %702 = vmatmul.mubr.f32.gmra.mrb[0].mxu0 %v399
        %v703 = vpop.f32.mrb[0].mxu0
        %v704 = vadd.f32 0.0, %v703
        %v705 = vpop.f32.mrb[0].mxu0
        %706 = vmatprep.mubr.f32.mxu0 0.0
        %707 = vmatmul.mubr.f32.gmra.mrb[0].mxu0 %v400
        %v708 = vpop.f32.mrb[0].mxu0
        %v709 = vadd.f32 0.0, %v708
        %v710 = vpop.f32.mrb[0].mxu0
        %711 = vdwg.mxu0
        %v712 = vadd.f32 %v613, %v704
        %v713 = vadd.f32 %v618, %v709
        %v714 = vld [vmem:[%s5] sm:$0x1]
        %v716 = vlaneseq
        %v717 = vshrl.u32 %v716, 7
        %v718 = vsub.s32 0, %v717
        %v719 = vrot.slane %v714, %v718
        %v721 = vadd.f32 %v712, %v719
        %v722 = vadd.f32 %v713, %v719
        %v723 = vmax.f32 %v721, 0.0
        %v724 = vmax.f32 %v722, 0.0
        %v725 = vld [vmem:[#allocation11] sm:$0xff]
        %v726 = vld [vmem:[#allocation11 + $0x8] sm:$0xff]
        %v727 = vld [vmem:[#allocation11 + $0x10] sm:$0xff]
        %v728 = vld [vmem:[#allocation11 + $0x18] sm:$0xff]
        %v729 = vld [vmem:[#allocation11 + $0x20] sm:$0xff]
        %v730 = vld [vmem:[#allocation11 + $0x28] sm:$0xff]
        %v731 = vld [vmem:[#allocation11 + $0x30] sm:$0xff]
        %v732 = vld [vmem:[#allocation11 + $0x38] sm:$0xff]
        %v733 = vld [vmem:[#allocation11 + $0x40] sm:$0xff]
        %v734 = vld [vmem:[#allocation11 + $0x48] sm:$0xff]
        %v735 = vld [vmem:[#allocation11 + $0x50] sm:$0xff]
        %v736 = vld [vmem:[#allocation11 + $0x58] sm:$0xff]
        %v737 = vld [vmem:[#allocation11 + $0x60] sm:$0xff]
        %v738 = vld [vmem:[#allocation11 + $0x68] sm:$0xff]
        %v739 = vld [vmem:[#allocation11 + $0x70] sm:$0xff]
        %v740 = vld [vmem:[#allocation11 + $0x78] sm:$0xff]
        %v741 = vld [vmem:[%s7] sm:$0x1]
        %v743 = vlaneseq
        %v744 = vshrl.u32 %v743, 7
        %v745 = vsub.s32 0, %v744
        %v746 = vrot.slane %v741, %v745
        %748 = vmatprep.subr.mxu0 0.0
        %749 = vmatpush1.msra.mxu0 %v725
        %750 = vmatprep.subr.mxu0 0.0
        %751 = vmatpush1.msra.mxu0 %v726
        %752 = vmatprep.subr.mxu0 0.0
        %753 = vmatpush1.msra.mxu0 %v727
        %754 = vmatprep.subr.mxu0 0.0
        %755 = vmatpush1.msra.mxu0 %v728
        %756 = vmatprep.subr.mxu0 0.0
        %757 = vmatpush1.msra.mxu0 %v729
        %758 = vmatprep.subr.mxu0 0.0
        %759 = vmatpush1.msra.mxu0 %v730
        %760 = vmatprep.subr.mxu0 0.0
        %761 = vmatpush1.msra.mxu0 %v731
        %762 = vmatprep.subr.mxu0 0.0
        %763 = vmatpush1.msra.mxu0 %v732
        %764 = vmatprep.subr.mxu0 0.0
        %765 = vmatpush1.msra.mxu0 %v733
        %766 = vmatprep.subr.mxu0 0.0
        %767 = vmatpush1.msra.mxu0 %v734
        %768 = vmatprep.subr.mxu0 0.0
        %769 = vmatpush1.msra.mxu0 %v735
        %770 = vmatprep.subr.mxu0 0.0
        %771 = vmatpush1.msra.mxu0 %v736
        %772 = vmatprep.subr.mxu0 0.0
        %773 = vmatpush1.msra.mxu0 %v737
        %774 = vmatprep.subr.mxu0 0.0
        %775 = vmatpush1.msra.mxu0 %v738
        %776 = vmatprep.subr.mxu0 0.0
        %777 = vmatpush1.msra.mxu0 %v739
        %778 = vmatprep.subr.mxu0 0.0
        %779 = vmatpush1.msra.mxu0 %v740
        %780 = vmatprep.subr.mxu0 0.0
        %781 = vmatpush1.msra.mxu0 0.0
        %782 = vmatprep.subr.mxu0 0.0
        %783 = vmatpush1.msra.mxu0 0.0
        %784 = vmatprep.subr.mxu0 0.0
        %785 = vmatpush1.msra.mxu0 0.0
        %786 = vmatprep.subr.mxu0 0.0
        %787 = vmatpush1.msra.mxu0 0.0
        %788 = vmatprep.subr.mxu0 0.0
        %789 = vmatpush1.msra.mxu0 0.0
        %790 = vmatprep.subr.mxu0 0.0
        %791 = vmatpush1.msra.mxu0 0.0
        %792 = vmatprep.subr.mxu0 0.0
        %793 = vmatpush1.msra.mxu0 0.0
        %794 = vmatprep.subr.mxu0 0.0
        %795 = vmatpush1.msra.mxu0 0.0
        %796 = vmatprep.subr.mxu0 0.0
        %797 = vmatpush1.msra.mxu0 0.0
        %798 = vmatprep.subr.mxu0 0.0
        %799 = vmatpush1.msra.mxu0 0.0
        %800 = vmatprep.subr.mxu0 0.0
        %801 = vmatpush1.msra.mxu0 0.0
        %802 = vmatprep.subr.mxu0 0.0
        %803 = vmatpush1.msra.mxu0 0.0
        %804 = vmatprep.subr.mxu0 0.0
        %805 = vmatpush1.msra.mxu0 0.0
        %806 = vmatprep.subr.mxu0 0.0
        %807 = vmatpush1.msra.mxu0 0.0
        %808 = vmatprep.subr.mxu0 0.0
        %809 = vmatpush1.msra.mxu0 0.0
        %810 = vmatprep.subr.mxu0 0.0
        %811 = vmatpush1.msra.mxu0 0.0
        %812 = vmatprep.mubr.f32.mxu0 0.0
        %813 = vmatmul.mubr.f32.gmra.mrb[0].mxu0 %v723
        %v814 = vpop.f32.mrb[0].mxu0
        %v815 = vadd.f32 %v746, %v814
        %v816 = vpop.f32.mrb[0].mxu0
        %817 = vmatprep.mubr.f32.mxu0 0.0
        %818 = vmatmul.mubr.f32.gmra.mrb[0].mxu0 %v724
        %v819 = vpop.f32.mrb[0].mxu0
        %v820 = vadd.f32 %v746, %v819
        %v821 = vpop.f32.mrb[0].mxu0
        %822 = vdwg.mxu0
        %v823 = vmax.f32 %v815, 0.0
        %v824 = vmax.f32 %v820, 0.0
        %825 = vst [vmem:[%s394] sm:$0xff] %v823
        %826 = vst [vmem:[%s394 + $0x8] sm:$0xff] %v824
        %s827 = sand.u32 %s209, 1
        %s828 = scalar_lea.sflag [#allocation4], %s827
        %s829 = sand.u32 %s209, 1
        %s830 = smul.addr %s829, 16
        %s831 = scalar_lea.vmem [#allocation13], %s830
        // Predicated region
        $region77: #{tpu_custom_call.1} parent=51 // pred_check
          %p832 = pneg %p219
        $region78: #{tpu_custom_call.1} parent=51 // pred_check_branch
          %834 = sbr.rel (%p832) target = $region80
        $region79: #{tpu_custom_call.1} parent=51 // pred_region
          %s835 = smul.u32 2, %s28
          %s837 = ssub.s32 256, 256
          %838 = vsyncadd %s828, %s837
          %s839 = smul.addr %s835, 128
          %s840 = scalar_lea.hbm %s8, %s839
          %s841 = sshll.u32 %s831, 4
          %s842 = int_to_ptr.vmem [resolvable:$true] %s841
          %847 = dma.vmem_to_hbm [thread:$0]  %s842, 256, %s840, %s828, 128, 128, 8
        $region80: #{tpu_custom_call.1} parent=51 // pred_fallthru
          _
      $region52: #{tpu_custom_call.1} parent=5 // pred_fallthru
        _
      %p848 = scmp.le.s32.totalorder 2, %s23
      // Predicated region
      $region81: #{tpu_custom_call.1} parent=5 // pred_check
        %p849 = pneg %p848
      $region82: #{tpu_custom_call.1} parent=5 // pred_check_branch
        %851 = sbr.rel (%p849) target = $region84
      $region83: #{tpu_custom_call.1} parent=5 // pred_region
        %s852 = ssub.s32 %s23, 2
        // Predicated region
        $region85: #{tpu_custom_call.1} parent=83 // pred_check
          %p853 = pneg %p225
        $region86: #{tpu_custom_call.1} parent=83 // pred_check_branch
          %855 = sbr.rel (%p853) target = $region88
        $region87: #{tpu_custom_call.1} parent=83 // pred_region
          %s856 = sand.u32 %s210, 1
          %s857 = scalar_lea.sflag [#allocation4], %s856
          %s858 = sand.u32 %s210, 1
          %s859 = smul.addr %s858, 16
          %s860 = scalar_lea.vmem [#allocation13], %s859
          %861 = dma.done %s857, 256
        $region88: #{tpu_custom_call.1} parent=83 // pred_fallthru
          _
      $region84: #{tpu_custom_call.1} parent=5 // pred_fallthru
        _
    $region6: #{tpu_custom_call.1} parent=1 // loop_footer
      %s27 = sadd.s32 1, %s23
    $region7: #{tpu_custom_call.1} parent=1 // loop_footer_branch
      %22 = sbr.rel target = $region3
    $region8: #{tpu_custom_call.1} parent=1 // loop_exit
      _
    %862 = vsyncpa [#allocation3], 1
    %s863 = scalar_lea.sflag [#allocation3], 1
    %864 = vsyncpa %s863, 1
    %865 = vsyncpa [#allocation6], 1
    %s866 = scalar_lea.sflag [#allocation6], 1
    %867 = vsyncpa %s866, 1
    %868 = vsyncpa [#allocation9], 1
    %869 = vsyncpa [#allocation12], 1
    %870 = vsyncpa [#allocation4], 1
    %s871 = scalar_lea.sflag [#allocation4], 1
    %872 = vsyncpa %s871, 1

</llo_original>
